<compile_context>
chip_gen: v6e
topology: v6e:2x2x1
jax: 0.10.0
libtpu: 0.0.40
codegen_flags: <defaults>
</compile_context>

<pallas_src>
import functools

import jax
import jax.numpy as jnp
from jax.experimental import pallas as pl
from jax.experimental.pallas import tpu as pltpu


# --------------------------------------------------------------------------
# Generation-aware VMEM capacity (v5e/v6e: 128 MiB, v7x: 64 MiB per core).
# --------------------------------------------------------------------------
def _vmem_capacity_bytes():
    try:
        cap = getattr(pltpu.get_tpu_info(), "vmem_capacity_bytes", None)
        if cap:
            return int(cap)
    except Exception:
        pass
    return 64 * 1024 * 1024  # conservative default (v7x per-core VMEM)


# --------------------------------------------------------------------------
# Fused kernel: one image per grid step; x is read once and out written once.
# --------------------------------------------------------------------------
def _fused_kernel(x_ref, w1_ref, b1_ref, whw_ref, bhw_ref, out_ref,
                  *, inv_w, inv_h):
    x = x_ref[0]                                             # (C, H, W), input dtype
    # coordinate pools with f32 accumulation (no full f32 copy of the block)
    xh = jnp.sum(x, axis=2, dtype=jnp.float32) * inv_w       # (C, H)
    xw = jnp.sum(x, axis=1, dtype=jnp.float32) * inv_h       # (C, W)

    w1 = w1_ref[...]                                         # (mip, C)  BN pre-fused
    b1 = b1_ref[...]                                         # (mip, 1)

    def gate(v, idx):                                        # (C, L) -> (C, L) gate
        y = jnp.dot(w1, v, preferred_element_type=jnp.float32) + b1
        y = y * (jnp.clip(y + 3.0, 0.0, 6.0) * (1.0 / 6.0))  # h_swish
        return jax.nn.sigmoid(
            jnp.dot(whw_ref[idx], y, preferred_element_type=jnp.float32)
            + bhw_ref[idx])

    a_h = gate(xh, 0)                                        # (C, H)
    a_w = gate(xw, 1)                                        # (C, W)
    out_ref[0] = (x * a_h[:, :, None] * a_w[:, None, :]).astype(out_ref.dtype)


# --------------------------------------------------------------------------
# Tiled fallback, pass 1: coordinate pools + squeeze + gates -> a_h, a_w.
# Grid: (N, H_pad // tile_h); H-tile axis is a reduction ("arbitrary").
# Per-tile W-pooled columns are stashed in a per-image scratch; all matmuls
# and the (lane-dense) a_h / a_w stores happen once at the last H tile.
# --------------------------------------------------------------------------
def _gate_kernel(x_ref, w1_ref, b1_ref, whw_ref, bhw_ref,
                 ah_ref, aw_ref, xh_acc, xw_acc, *, inv_w, inv_h):
    t = pl.program_id(1)
    tile_h = x_ref.shape[2]

    @pl.when(t == 0)
    def _init():
        xw_acc[...] = jnp.zeros_like(xw_acc)

    x = x_ref[0]                                             # (C, tile_h, W)
    col0 = pl.multiple_of(t * tile_h, tile_h)
    # per-row means (pool over W) for this H tile -> per-image scratch columns
    xh_acc[:, pl.ds(col0, tile_h)] = jnp.sum(x, axis=2, dtype=jnp.float32) * inv_w
    # running column sums (pool over H) accumulated across H tiles
    xw_acc[...] += jnp.sum(x, axis=1, dtype=jnp.float32)     # (C, W)

    @pl.when(t == pl.num_programs(1) - 1)
    def _finalize():
        w1 = w1_ref[...]                                     # (mip, C)  BN pre-fused
        b1 = b1_ref[...]                                     # (mip, 1)

        def gate(v, idx):
            y = jnp.dot(w1, v, preferred_element_type=jnp.float32) + b1
            y = y * (jnp.clip(y + 3.0, 0.0, 6.0) * (1.0 / 6.0))
            return jax.nn.sigmoid(
                jnp.dot(whw_ref[idx], y, preferred_element_type=jnp.float32)
                + bhw_ref[idx])

        ah_ref[0] = gate(xh_acc[...], 0)                     # one lane-dense (C, H_pad) store
        aw_ref[0] = gate(xw_acc[...] * inv_h, 1)             # (C, W)


# --------------------------------------------------------------------------
# Tiled fallback, pass 2: out = x * a_h (bcast over W) * a_w (bcast over H).
# Grid: (N // bt, H_pad // tile_h), both axes parallel (pure elementwise).
# --------------------------------------------------------------------------
def _apply_kernel(x_ref, ah_ref, aw_ref, out_ref):
    tile_h = x_ref.shape[2]
    col0 = pl.multiple_of(pl.program_id(1) * tile_h, tile_h)
    # a_h is tiny relative to x; the dynamic lane slice here is second-order.
    ah = ah_ref[:, :, pl.ds(col0, tile_h)]                   # (bt, C, tile_h) f32
    aw = aw_ref[...]                                         # (bt, C, W)      f32
    x = x_ref[...]                                           # (bt, C, tile_h, W)
    out_ref[...] = (x * ah[:, :, :, None] * aw[:, :, None, :]).astype(out_ref.dtype)


def _pick_tile_h(C, H, W, itemsize, sub, budget):
    """Largest H tile (multiple of the dtype sublane step `sub`) within budget."""
    row_bytes = max(1, C * W * itemsize)
    cap = (budget // row_bytes) // sub * sub
    cap = max(sub, cap)
    h_up = -(-H // sub) * sub
    cap = min(cap, h_up)
    best_div = 0
    d = sub
    while d <= cap:
        if H % d == 0:
            best_div = d
        d += sub
    if best_div >= max(sub, cap // 2):      # prefer an exact divisor (no padding)
        return best_div
    return cap                              # ragged: H gets zero-padded to n_h*cap


def coord_att_pallas(x, params, *, block_budget_bytes=None, fuse=None):
    """x: (N, C, H, W) float32 or bfloat16.  Returns same shape/dtype."""
    N, C, H, W = x.shape
    oup, mip = params["wh"].shape
    assert oup == C, "CoordAtt final multiply requires oup == inp (channels)"

    # ---- fold inference BatchNorm into conv1, pack the gate convs ----------
    f32 = jnp.float32
    inv_std = jax.lax.rsqrt(params["var"].astype(f32) + 1e-5)
    scale = params["gamma"].astype(f32) * inv_std                         # (mip,)
    w1f = params["w1"].astype(f32) * scale[:, None]                       # (mip, C)
    b1f = ((params["b1"].astype(f32) - params["mean"].astype(f32)) * scale
           + params["beta"].astype(f32))[:, None]                         # (mip, 1)
    whw = jnp.stack([params["wh"], params["ww"]]).astype(f32)             # (2, oup, mip)
    bhw = jnp.stack([params["bh"], params["bw"]]).astype(f32)[..., None]  # (2, oup, 1)

    itemsize = jnp.dtype(x.dtype).itemsize
    sub = 8 * max(1, 4 // itemsize)          # sublane step: 8 f32 / 16 bf16 / 32 int8

    # ---- generation-aware VMEM budgets --------------------------------------
    vmem_cap = _vmem_capacity_bytes()
    vmem_limit = min(int(vmem_cap * 0.8), 112 * 1024 * 1024)
    if block_budget_bytes is None:
        block_budget_bytes = max(vmem_limit // 10, 1 << 20)

    plane_in = C * H * W * itemsize
    plane_f32 = C * H * W * 4
    weight_bytes = 4 * (w1f.size + b1f.size + whw.size + bhw.size)
    gate_bytes = 8 * C * (H + W)
    # in + out double-buffered plus f32 broadcast temps + weights/gates
    fused_need = 4 * plane_in + 2 * plane_f32 + weight_bytes + gate_bytes
    if fuse is None:
        fuse = fused_need + (4 << 20) <= vmem_limit

    # ======================= fused single-pass path =========================
    if fuse:
        return pl.pallas_call(
            functools.partial(_fused_kernel, inv_w=1.0 / W, inv_h=1.0 / H),
            out_shape=jax.ShapeDtypeStruct((N, C, H, W), x.dtype),
            grid_spec=pltpu.PrefetchScalarGridSpec(
                num_scalar_prefetch=0,
                grid=(N,),
                in_specs=[
                    pl.BlockSpec((1, C, H, W), lambda n: (n, 0, 0, 0)),   # x
                    pl.BlockSpec((mip, C), lambda n: (0, 0)),             # w1 (BN fused)
                    pl.BlockSpec((mip, 1), lambda n: (0, 0)),             # b1 (BN fused)
                    pl.BlockSpec((2, oup, mip), lambda n: (0, 0, 0)),     # wh / ww
                    pl.BlockSpec((2, oup, 1), lambda n: (0, 0, 0)),       # bh / bw
                ],
                out_specs=pl.BlockSpec((1, C, H, W), lambda n: (n, 0, 0, 0)),
            ),
            compiler_params=pltpu.CompilerParams(
                dimension_semantics=("parallel",),
                vmem_limit_bytes=vmem_limit),
        )(x, w1f, b1f, whw, bhw)

    # ==================== two-pass tiled fallback (large planes) ============
    tile_h = _pick_tile_h(C, H, W, itemsize, sub, block_budget_bytes)
    n_h = -(-H // tile_h)
    H_pad = n_h * tile_h
    # Zero-padding H keeps the H-mean exact (true 1/H divisor below); padded
    # a_h rows / output rows are sliced away at the end.
    xp = x if H_pad == H else jnp.pad(x, ((0, 0), (0, 0), (0, H_pad - H), (0, 0)))

    a_h, a_w = pl.pallas_call(
        functools.partial(_gate_kernel, inv_w=1.0 / W, inv_h=1.0 / H),
        out_shape=(jax.ShapeDtypeStruct((N, C, H_pad), jnp.float32),
                   jax.ShapeDtypeStruct((N, C, W), jnp.float32)),
        grid_spec=pltpu.PrefetchScalarGridSpec(
            num_scalar_prefetch=0,
            grid=(N, n_h),
            in_specs=[
                pl.BlockSpec((1, C, tile_h, W), lambda n, t: (n, 0, t, 0)),  # x
                pl.BlockSpec((mip, C), lambda n, t: (0, 0)),                 # w1
                pl.BlockSpec((mip, 1), lambda n, t: (0, 0)),                 # b1
                pl.BlockSpec((2, oup, mip), lambda n, t: (0, 0, 0)),         # wh / ww
                pl.BlockSpec((2, oup, 1), lambda n, t: (0, 0, 0)),           # bh / bw
            ],
            out_specs=(
                pl.BlockSpec((1, C, H_pad), lambda n, t: (n, 0, 0)),         # a_h
                pl.BlockSpec((1, C, W), lambda n, t: (n, 0, 0)),             # a_w
            ),
            scratch_shapes=[pltpu.VMEM((C, H_pad), jnp.float32),             # xh columns
                            pltpu.VMEM((C, W), jnp.float32)],                # xw sums
        ),
        compiler_params=pltpu.CompilerParams(
            dimension_semantics=("parallel", "arbitrary"),
            vmem_limit_bytes=vmem_limit),
    )(xp, w1f, b1f, whw, bhw)

    # Fold batches per grid step when planes are tiny, but keep >=2 steps on a
    # parallel axis when possible (v7x has 2 TensorCores).
    bt = 1
    for d in range(N, 0, -1):
        if N % d:
            continue
        if d * C * tile_h * W * itemsize > block_budget_bytes:
            continue
        if n_h == 1 and N >= 2 and N // d < 2:
            continue
        bt = d
        break

    out = pl.pallas_call(
        _apply_kernel,
        out_shape=jax.ShapeDtypeStruct((N, C, H_pad, W), x.dtype),
        grid_spec=pltpu.PrefetchScalarGridSpec(
            num_scalar_prefetch=0,
            grid=(N // bt, n_h),
            in_specs=[
                pl.BlockSpec((bt, C, tile_h, W), lambda b, t: (b, 0, t, 0)),  # x
                pl.BlockSpec((bt, C, H_pad), lambda b, t: (b, 0, 0)),         # a_h
                pl.BlockSpec((bt, C, W), lambda b, t: (b, 0, 0)),             # a_w
            ],
            out_specs=pl.BlockSpec((bt, C, tile_h, W), lambda b, t: (b, 0, t, 0)),
        ),
        compiler_params=pltpu.CompilerParams(
            dimension_semantics=("parallel", "parallel"),
            vmem_limit_bytes=vmem_limit),
    )(xp, a_h, a_w)

    return out if H_pad == H else out[:, :, :H, :]


# --------------------------------------------------------------------------
# Pure-JAX reference (NCHW, mirrors the PyTorch module with un-fused BN)
# --------------------------------------------------------------------------
def coord_att_reference(x, params):
    hp = jax.lax.Precision.HIGHEST
    x = x.astype(jnp.float32)
    n, c, h, w = x.shape
    xh = jnp.mean(x, axis=3)                                    # (n, c, h)
    xw = jnp.mean(x, axis=2)                                    # (n, c, w)
    y = jnp.concatenate([xh, xw], axis=2)                       # (n, c, h+w)
    y = jnp.einsum("mc,ncs->nms", params["w1"], y, precision=hp) \
        + params["b1"][None, :, None]
    inv_std = jax.lax.rsqrt(params["var"] + 1e-5)
    y = ((y - params["mean"][None, :, None]) * inv_std[None, :, None]
         * params["gamma"][None, :, None] + params["beta"][None, :, None])
    y = y * jnp.clip(y + 3.0, 0.0, 6.0) / 6.0                   # h_swish
    yh, yw = y[:, :, :h], y[:, :, h:]
    a_h = jax.nn.sigmoid(jnp.einsum("om,nms->nos", params["wh"], yh, precision=hp)
                         + params["bh"][None, :, None])         # (n, oup, h)
    a_w = jax.nn.sigmoid(jnp.einsum("om,nms->nos", params["ww"], yw, precision=hp)
                         + params["bw"][None, :, None])         # (n, oup, w)
    return x * a_w[:, :, None, :] * a_h[:, :, :, None]


def init_params(key, inp, oup, reduction=32):
    """PyTorch-native parameter shapes (1x1 convs squeezed to 2-D)."""
    mip = max(8, inp // reduction)
    k = jax.random.split(key, 10)
    return {
        "w1": 0.1 * jax.random.normal(k[0], (mip, inp), jnp.float32),
        "b1": 0.1 * jax.random.normal(k[1], (mip,), jnp.float32),
        "gamma": 1.0 + 0.1 * jax.random.normal(k[2], (mip,), jnp.float32),
        "beta": 0.1 * jax.random.normal(k[3], (mip,), jnp.float32),
        "mean": 0.1 * jax.random.normal(k[4], (mip,), jnp.float32),
        "var": jax.random.uniform(k[5], (mip,), jnp.float32, 0.5, 1.5),
        "wh": 0.1 * jax.random.normal(k[6], (oup, mip), jnp.float32),
        "bh": 0.1 * jax.random.normal(k[7], (oup,), jnp.float32),
        "ww": 0.1 * jax.random.normal(k[8], (oup, mip), jnp.float32),
        "bw": 0.1 * jax.random.normal(k[9], (oup,), jnp.float32),
    }


if __name__ == "__main__":
    key = jax.random.PRNGKey(0)
    kx1, kp1, kx2, kp2 = jax.random.split(key, 4)

    # ---- Test 1: small plane -> fused single-pass path ----
    N, C, H, W = 2, 4, 16, 16              # inp == oup == C (required by final mul)
    x1 = jax.random.normal(kx1, (N, C, H, W), jnp.float32)
    p1 = init_params(kp1, inp=C, oup=C, reduction=32)
    out1 = jax.block_until_ready(jax.jit(coord_att_pallas)(x1, p1))
    ref1 = coord_att_reference(x1, p1)
    assert out1.shape == (N, C, H, W)
    err1 = jnp.max(jnp.abs(out1.astype(jnp.float32) - ref1))
    assert jnp.allclose(out1.astype(jnp.float32), ref1, rtol=1e-3, atol=1e-3), \
        f"fused-path max err {err1}"

    # ---- Test 2: force the tiled two-pass fallback (incl. ragged-H padding) ----
    N2, C2, H2, W2 = 2, 8, 20, 128         # H2=20 -> padded to 24 with tile_h=8
    x2 = jax.random.normal(kx2, (N2, C2, H2, W2), jnp.float32)
    p2 = init_params(kp2, inp=C2, oup=C2, reduction=32)
    fwd2 = jax.jit(functools.partial(coord_att_pallas, fuse=False,
                                     block_budget_bytes=16 * 1024))
    out2 = jax.block_until_ready(fwd2(x2, p2))
    ref2 = coord_att_reference(x2, p2)
    assert out2.shape == (N2, C2, H2, W2)
    err2 = jnp.max(jnp.abs(out2.astype(jnp.float32) - ref2))
    assert jnp.allclose(out2.astype(jnp.float32), ref2, rtol=1e-3, atol=1e-3), \
        f"tiled-path max err {err2}"

    print("KERNEL_OK")
</pallas_src>

<mosaic_0001>
module attributes {stable_mosaic.version = 11 : i64} {
  func.func @_fused_kernel(%arg0: i32, %arg1: memref<1x4x16x16xf32, #tpu.memory_space<vmem>>, %arg2: memref<8x4xf32, #tpu.memory_space<vmem>>, %arg3: memref<8x1xf32, #tpu.memory_space<vmem>>, %arg4: memref<2x4x8xf32, #tpu.memory_space<vmem>>, %arg5: memref<2x4x1xf32, #tpu.memory_space<vmem>>, %arg6: memref<1x4x16x16xf32, #tpu.memory_space<vmem>>) attributes {dimension_semantics = [#tpu.dimension_semantics<parallel>], iteration_bounds = array<i64: 2>, scalar_prefetch = 0 : i64, scratch_operands = 0 : i64, tpu.core_type = #tpu.core_type<tc>, window_params = [{transform_indices = @transform_0, window_bounds = array<i64: 1, 4, 16, 16>}, {pipeline_mode = #tpu.pipeline_mode<synchronous>, transform_indices = @transform_1, window_bounds = array<i64: 8, 4>}, {pipeline_mode = #tpu.pipeline_mode<synchronous>, transform_indices = @transform_2, window_bounds = array<i64: 8, 1>}, {pipeline_mode = #tpu.pipeline_mode<synchronous>, transform_indices = @transform_3, window_bounds = array<i64: 2, 4, 8>}, {pipeline_mode = #tpu.pipeline_mode<synchronous>, transform_indices = @transform_4, window_bounds = array<i64: 2, 4, 1>}, {transform_indices = @transform_5, window_bounds = array<i64: 1, 4, 16, 16>}]} {
    %c0 = arith.constant 0 : index
    %c0_0 = arith.constant 0 : index
    %c0_1 = arith.constant 0 : index
    %c0_2 = arith.constant 0 : index
    %0 = vector.load %arg1[%c0, %c0_0, %c0_1, %c0_2] : memref<1x4x16x16xf32, #tpu.memory_space<vmem>>, vector<1x4x16x16xf32>
    %1 = vector.shape_cast %0 : vector<1x4x16x16xf32> to vector<4x16x16xf32>
    %cst = arith.constant dense<0.000000e+00> : vector<4x16xf32>
    %2 = vector.multi_reduction <add>, %1, %cst [2] : vector<4x16x16xf32> to vector<4x16xf32>
    %cst_3 = arith.constant 6.250000e-02 : f32
    %3 = vector.broadcast %cst_3 : f32 to vector<4x16xf32>
    %4 = arith.mulf %2, %3 : vector<4x16xf32>
    %cst_4 = arith.constant dense<0.000000e+00> : vector<4x16xf32>
    %5 = vector.multi_reduction <add>, %1, %cst_4 [1] : vector<4x16x16xf32> to vector<4x16xf32>
    %cst_5 = arith.constant 6.250000e-02 : f32
    %6 = vector.broadcast %cst_5 : f32 to vector<4x16xf32>
    %7 = arith.mulf %5, %6 : vector<4x16xf32>
    %c0_6 = arith.constant 0 : index
    %c0_7 = arith.constant 0 : index
    %8 = vector.load %arg2[%c0_6, %c0_7] : memref<8x4xf32, #tpu.memory_space<vmem>>, vector<8x4xf32>
    %c0_8 = arith.constant 0 : index
    %c0_9 = arith.constant 0 : index
    %9 = vector.load %arg3[%c0_8, %c0_9] : memref<8x1xf32, #tpu.memory_space<vmem>>, vector<8x1xf32>
    %cst_10 = arith.constant dense<0.000000e+00> : vector<8x16xf32>
    %10 = tpu.matmul %8, %4, %cst_10 {dimension_numbers = #tpu.dot_dimension_numbers<[1], [0], [0], [1], [0, 0, 1, 1], [], []>} : vector<8x4xf32>, vector<4x16xf32>, vector<8x16xf32> -> vector<8x16xf32>
    %11 = vector.broadcast %9 : vector<8x1xf32> to vector<8x16xf32>
    %12 = arith.addf %10, %11 : vector<8x16xf32>
    %cst_11 = arith.constant 3.000000e+00 : f32
    %13 = vector.broadcast %cst_11 : f32 to vector<8x16xf32>
    %14 = arith.addf %12, %13 : vector<8x16xf32>
    %cst_12 = arith.constant 0.000000e+00 : f32
    %cst_13 = arith.constant 6.000000e+00 : f32
    %15 = vector.broadcast %cst_12 : f32 to vector<8x16xf32>
    %16 = arith.maximumf %15, %14 : vector<8x16xf32>
    %17 = vector.broadcast %cst_13 : f32 to vector<8x16xf32>
    %18 = arith.minimumf %17, %16 : vector<8x16xf32>
    %cst_14 = arith.constant 0.166666672 : f32
    %19 = vector.broadcast %cst_14 : f32 to vector<8x16xf32>
    %20 = arith.mulf %18, %19 : vector<8x16xf32>
    %21 = arith.mulf %12, %20 : vector<8x16xf32>
    %c0_15 = arith.constant 0 : index
    %c0_16 = arith.constant 0 : index
    %c0_17 = arith.constant 0 : index
    %22 = vector.load %arg4[%c0_15, %c0_16, %c0_17] : memref<2x4x8xf32, #tpu.memory_space<vmem>>, vector<1x4x8xf32>
    %23 = vector.shape_cast %22 : vector<1x4x8xf32> to vector<4x8xf32>
    %cst_18 = arith.constant dense<0.000000e+00> : vector<4x16xf32>
    %24 = tpu.matmul %23, %21, %cst_18 {dimension_numbers = #tpu.dot_dimension_numbers<[1], [0], [0], [1], [0, 0, 1, 1], [], []>} : vector<4x8xf32>, vector<8x16xf32>, vector<4x16xf32> -> vector<4x16xf32>
    %c0_19 = arith.constant 0 : index
    %c0_20 = arith.constant 0 : index
    %c0_21 = arith.constant 0 : index
    %25 = vector.load %arg5[%c0_19, %c0_20, %c0_21] : memref<2x4x1xf32, #tpu.memory_space<vmem>>, vector<1x4x1xf32>
    %26 = vector.shape_cast %25 : vector<1x4x1xf32> to vector<4x1xf32>
    %27 = vector.broadcast %26 : vector<4x1xf32> to vector<4x16xf32>
    %28 = arith.addf %24, %27 : vector<4x16xf32>
    %29 = arith.negf %28 : vector<4x16xf32>
    %30 = math.exp %29 : vector<4x16xf32>
    %cst_22 = arith.constant 1.000000e+00 : f32
    %31 = vector.broadcast %cst_22 : f32 to vector<4x16xf32>
    %32 = arith.addf %31, %30 : vector<4x16xf32>
    %33 = arith.divf %31, %32 : vector<4x16xf32>
    %cst_23 = arith.constant dense<0.000000e+00> : vector<8x16xf32>
    %34 = tpu.matmul %8, %7, %cst_23 {dimension_numbers = #tpu.dot_dimension_numbers<[1], [0], [0], [1], [0, 0, 1, 1], [], []>} : vector<8x4xf32>, vector<4x16xf32>, vector<8x16xf32> -> vector<8x16xf32>
    %35 = vector.broadcast %9 : vector<8x1xf32> to vector<8x16xf32>
    %36 = arith.addf %34, %35 : vector<8x16xf32>
    %cst_24 = arith.constant 3.000000e+00 : f32
    %37 = vector.broadcast %cst_24 : f32 to vector<8x16xf32>
    %38 = arith.addf %36, %37 : vector<8x16xf32>
    %cst_25 = arith.constant 0.000000e+00 : f32
    %cst_26 = arith.constant 6.000000e+00 : f32
    %39 = vector.broadcast %cst_25 : f32 to vector<8x16xf32>
    %40 = arith.maximumf %39, %38 : vector<8x16xf32>
    %41 = vector.broadcast %cst_26 : f32 to vector<8x16xf32>
    %42 = arith.minimumf %41, %40 : vector<8x16xf32>
    %cst_27 = arith.constant 0.166666672 : f32
    %43 = vector.broadcast %cst_27 : f32 to vector<8x16xf32>
    %44 = arith.mulf %42, %43 : vector<8x16xf32>
    %45 = arith.mulf %36, %44 : vector<8x16xf32>
    %c1 = arith.constant 1 : index
    %c0_28 = arith.constant 0 : index
    %c0_29 = arith.constant 0 : index
    %46 = vector.load %arg4[%c1, %c0_28, %c0_29] : memref<2x4x8xf32, #tpu.memory_space<vmem>>, vector<1x4x8xf32>
    %47 = vector.shape_cast %46 : vector<1x4x8xf32> to vector<4x8xf32>
    %cst_30 = arith.constant dense<0.000000e+00> : vector<4x16xf32>
    %48 = tpu.matmul %47, %45, %cst_30 {dimension_numbers = #tpu.dot_dimension_numbers<[1], [0], [0], [1], [0, 0, 1, 1], [], []>} : vector<4x8xf32>, vector<8x16xf32>, vector<4x16xf32> -> vector<4x16xf32>
    %c1_31 = arith.constant 1 : index
    %c0_32 = arith.constant 0 : index
    %c0_33 = arith.constant 0 : index
    %49 = vector.load %arg5[%c1_31, %c0_32, %c0_33] : memref<2x4x1xf32, #tpu.memory_space<vmem>>, vector<1x4x1xf32>
    %50 = vector.shape_cast %49 : vector<1x4x1xf32> to vector<4x1xf32>
    %51 = vector.broadcast %50 : vector<4x1xf32> to vector<4x16xf32>
    %52 = arith.addf %48, %51 : vector<4x16xf32>
    %53 = arith.negf %52 : vector<4x16xf32>
    %54 = math.exp %53 : vector<4x16xf32>
    %cst_34 = arith.constant 1.000000e+00 : f32
    %55 = vector.broadcast %cst_34 : f32 to vector<4x16xf32>
    %56 = arith.addf %55, %54 : vector<4x16xf32>
    %57 = arith.divf %55, %56 : vector<4x16xf32>
    %58 = vector.shape_cast %33 : vector<4x16xf32> to vector<4x16x1xf32>
    %59 = vector.broadcast %58 : vector<4x16x1xf32> to vector<4x16x16xf32>
    %60 = arith.mulf %1, %59 : vector<4x16x16xf32>
    %61 = vector.shape_cast %57 : vector<4x16xf32> to vector<4x1x16xf32>
    %62 = vector.broadcast %61 : vector<4x1x16xf32> to vector<4x16x16xf32>
    %63 = arith.mulf %60, %62 : vector<4x16x16xf32>
    %c0_35 = arith.constant 0 : index
    %c0_36 = arith.constant 0 : index
    %c0_37 = arith.constant 0 : index
    %c0_38 = arith.constant 0 : index
    %64 = vector.load %arg6[%c0_35, %c0_36, %c0_37, %c0_38] : memref<1x4x16x16xf32, #tpu.memory_space<vmem>>, vector<1x4x16x16xf32>
    %65 = vector.shape_cast %64 : vector<1x4x16x16xf32> to vector<4x16x16xf32>
    %66 = vector.shape_cast %63 : vector<4x16x16xf32> to vector<1x4x16x16xf32>
    tpu.vector_store %arg6[%c0_35, %c0_36, %c0_37, %c0_38], %66 {strides = array<i32>} : memref<1x4x16x16xf32, #tpu.memory_space<vmem>>, vector<1x4x16x16xf32>,
    return
  }
  func.func @transform_0(%arg0: i32) -> (i32, i32, i32, i32) {
    %c0_i32 = arith.constant 0 : i32
    %c0_i32_0 = arith.constant 0 : i32
    %c0_i32_1 = arith.constant 0 : i32
    %c0_i32_2 = arith.constant 0 : i32
    return %arg0, %c0_i32, %c0_i32_0, %c0_i32_1 : i32, i32, i32, i32
  }
  func.func @transform_1(%arg0: i32) -> (i32, i32) {
    %c0_i32 = arith.constant 0 : i32
    %c0_i32_0 = arith.constant 0 : i32
    %c0_i32_1 = arith.constant 0 : i32
    return %c0_i32, %c0_i32_0 : i32, i32
  }
  func.func @transform_2(%arg0: i32) -> (i32, i32) {
    %c0_i32 = arith.constant 0 : i32
    %c0_i32_0 = arith.constant 0 : i32
    %c0_i32_1 = arith.constant 0 : i32
    return %c0_i32, %c0_i32_0 : i32, i32
  }
  func.func @transform_3(%arg0: i32) -> (i32, i32, i32) {
    %c0_i32 = arith.constant 0 : i32
    %c0_i32_0 = arith.constant 0 : i32
    %c0_i32_1 = arith.constant 0 : i32
    %c0_i32_2 = arith.constant 0 : i32
    return %c0_i32, %c0_i32_0, %c0_i32_1 : i32, i32, i32
  }
  func.func @transform_4(%arg0: i32) -> (i32, i32, i32) {
    %c0_i32 = arith.constant 0 : i32
    %c0_i32_0 = arith.constant 0 : i32
    %c0_i32_1 = arith.constant 0 : i32
    %c0_i32_2 = arith.constant 0 : i32
    return %c0_i32, %c0_i32_0, %c0_i32_1 : i32, i32, i32
  }
  func.func @transform_5(%arg0: i32) -> (i32, i32, i32, i32) {
    %c0_i32 = arith.constant 0 : i32
    %c0_i32_0 = arith.constant 0 : i32
    %c0_i32_1 = arith.constant 0 : i32
    %c0_i32_2 = arith.constant 0 : i32
    return %arg0, %c0_i32, %c0_i32_0, %c0_i32_1 : i32, i32, i32, i32
  }
}

</mosaic_0001>

<llo_original>
// kernel: coord_att_pallas.1
$region0: #{coord_att_pallas.1}
  #allocation0 [shape = 'u32[]', space=smem, size = 0x4, offset = 0x4, fixed_abs, tag = 'smem constant byte address 0x4 - core index']
  #allocation1 [shape = 'u32[144,128]{1,0:T(1,128)}', space=vmem, size = 0x12000, scoped, tag = 'internal scratch']
  %s0 = inlined_call_operand.hbm [shape: f32[2,4,16,16], index: 0, kind: input, shape index: {}]
  %s1 = inlined_call_operand.vmem [shape: f32[8,4], index: 1, kind: input, shape index: {}]
  %s2 = inlined_call_operand.vmem [shape: f32[8,1], index: 2, kind: input, shape index: {}]
  %s3 = inlined_call_operand.vmem [shape: f32[2,4,8], index: 3, kind: input, shape index: {}]
  %s4 = inlined_call_operand.vmem [shape: f32[2,4,1], index: 4, kind: input, shape index: {}]
  %s5 = inlined_call_operand.hbm [shape: f32[2,4,16,16], index: 5, kind: output, shape index: {}]
  %s6 = sld [smem:[#allocation0]]
  $region57: #{coord_att_pallas.1} parent=0
    _
  %s8 = ssub.s32 1, %s6
  %s9 = scalar_select 0, %s8, %s6
  $region1: #{coord_att_pallas.1} parent=0
    #allocation2 [shape = 'u8[65536]{0}', space=vmem, size = 0x10000, scoped, tag = 'input window, operand 0']
    #allocation3 [shape = 's32[2]{0}', space=sflag, size = 0x8, scoped, tag = 'scoped memory for coord_att_pallas.1']
    #allocation4 [shape = 's32[2]{0}', space=sflag, size = 0x8, scoped, tag = 'scoped memory for coord_att_pallas.1']
    #allocation5 [shape = 'u8[65536]{0}', space=vmem, size = 0x10000, scoped, tag = 'output window, operand 0']
    %10 = vsyncpa [#allocation3], 0
    %s11 = scalar_lea.sflag [#allocation3], 1
    %12 = vsyncpa %s11, 0
    %13 = vsyncpa [#allocation4], 0
    %s14 = scalar_lea.sflag [#allocation4], 1
    %15 = vsyncpa %s14, 0
    loop: start=0, step=1, limit=4
    $region2: #{coord_att_pallas.1} parent=1 // loop_pre_header
      _
    $region3: #{coord_att_pallas.1} parent=1 // loop_header
      %s17 = sphi 0, %s21
      %p18 = scmp.ge.s32.totalorder %s17, 4
      %s27 = sphi 0, %s29
      %s30 = sphi 0, %s27
      %s31 = sphi 0, %s30
      %s47 = sphi 0, %s31
      %s51 = sphi 0, %s51
      %s53 = sphi 0, %s51
      %s54 = sphi 0, %s53
      %s68 = sphi 0, %s54
      %s72 = sphi 0, %s72
      %s74 = sphi 0, %s72
      %s75 = sphi 0, %s74
      %s89 = sphi 0, %s75
      %s93 = sphi 0, %s93
      %s95 = sphi 0, %s93
      %s96 = sphi 0, %s95
      %s110 = sphi 0, %s96
      %s114 = sphi 0, %s114
      %s116 = sphi 0, %s114
      %s117 = sphi 0, %s116
      %s131 = sphi 0, %s117
      %s137 = sphi 0, %s139
      %s140 = sphi 0, %s137
      %s141 = sphi 0, %s140
      %s157 = sphi 0, %s141
    $region4: #{coord_att_pallas.1} parent=1 // loop_header_branch
      %20 = sbr.rel (%p18) target = $region8
    $region5: #{coord_att_pallas.1} parent=1 // loop_body
      %s22 = ssub.s32 %s17, 1
      %s23 = ssub.s32 %s17, 2
      %s24 = sadd.s32 %s17, 1
      %s25 = ssub.s32 %s17, %s24
      %p26 = scmp.eq.s32.totalorder %s25, 0
      %s28 = sadd.s32 %s27, 1
      %s29 = scalar_select %p26, %s27, %s28
      %p32 = pneg %p26
      %p33 = scmp.eq.s32.totalorder %s17, 1
      %p34 = por %p32, %p33
      %p35 = scmp.ne.s32.totalorder %s27, %s30
      %p36 = scmp.eq.s32.totalorder %s17, 0
      %p37 = por %p35, %p36
      %p38 = scmp.ne.s32.totalorder %s27, %s30
      %p39 = scmp.eq.s32.totalorder %s22, 1
      %p40 = por %p38, %p39
      %p41 = scmp.ne.s32.totalorder %s30, %s31
      %p42 = scmp.eq.s32.totalorder %s22, 0
      %p43 = por %p41, %p42
      %p44 = scmp.ne.s32.totalorder %s30, %s31
      %p45 = scmp.eq.s32.totalorder %s23, 1
      %p46 = por %p44, %p45
      %p48 = scmp.ne.s32.totalorder %s31, %s47
      %p49 = scmp.eq.s32.totalorder %s23, 0
      %p50 = por %p48, %p49
      %s52 = sadd.s32 %s51, 1
      %p55 = scmp.eq.s32.totalorder %s17, 1
      %p56 = scmp.ne.s32.totalorder %s51, %s53
      %p57 = scmp.eq.s32.totalorder %s17, 0
      %p58 = por %p56, %p57
      %p59 = scmp.ne.s32.totalorder %s51, %s53
      %p60 = scmp.eq.s32.totalorder %s22, 1
      %p61 = por %p59, %p60
      %p62 = scmp.ne.s32.totalorder %s53, %s54
      %p63 = scmp.eq.s32.totalorder %s22, 0
      %p64 = por %p62, %p63
      %p65 = scmp.ne.s32.totalorder %s53, %s54
      %p66 = scmp.eq.s32.totalorder %s23, 1
      %p67 = por %p65, %p66
      %p69 = scmp.ne.s32.totalorder %s54, %s68
      %p70 = scmp.eq.s32.totalorder %s23, 0
      %p71 = por %p69, %p70
      %s73 = sadd.s32 %s72, 1
      %p76 = scmp.eq.s32.totalorder %s17, 1
      %p77 = scmp.ne.s32.totalorder %s72, %s74
      %p78 = scmp.eq.s32.totalorder %s17, 0
      %p79 = por %p77, %p78
      %p80 = scmp.ne.s32.totalorder %s72, %s74
      %p81 = scmp.eq.s32.totalorder %s22, 1
      %p82 = por %p80, %p81
      %p83 = scmp.ne.s32.totalorder %s74, %s75
      %p84 = scmp.eq.s32.totalorder %s22, 0
      %p85 = por %p83, %p84
      %p86 = scmp.ne.s32.totalorder %s74, %s75
      %p87 = scmp.eq.s32.totalorder %s23, 1
      %p88 = por %p86, %p87
      %p90 = scmp.ne.s32.totalorder %s75, %s89
      %p91 = scmp.eq.s32.totalorder %s23, 0
      %p92 = por %p90, %p91
      %s94 = sadd.s32 %s93, 1
      %p97 = scmp.eq.s32.totalorder %s17, 1
      %p98 = scmp.ne.s32.totalorder %s93, %s95
      %p99 = scmp.eq.s32.totalorder %s17, 0
      %p100 = por %p98, %p99
      %p101 = scmp.ne.s32.totalorder %s93, %s95
      %p102 = scmp.eq.s32.totalorder %s22, 1
      %p103 = por %p101, %p102
      %p104 = scmp.ne.s32.totalorder %s95, %s96
      %p105 = scmp.eq.s32.totalorder %s22, 0
      %p106 = por %p104, %p105
      %p107 = scmp.ne.s32.totalorder %s95, %s96
      %p108 = scmp.eq.s32.totalorder %s23, 1
      %p109 = por %p107, %p108
      %p111 = scmp.ne.s32.totalorder %s96, %s110
      %p112 = scmp.eq.s32.totalorder %s23, 0
      %p113 = por %p111, %p112
      %s115 = sadd.s32 %s114, 1
      %p118 = scmp.eq.s32.totalorder %s17, 1
      %p119 = scmp.ne.s32.totalorder %s114, %s116
      %p120 = scmp.eq.s32.totalorder %s17, 0
      %p121 = por %p119, %p120
      %p122 = scmp.ne.s32.totalorder %s114, %s116
      %p123 = scmp.eq.s32.totalorder %s22, 1
      %p124 = por %p122, %p123
      %p125 = scmp.ne.s32.totalorder %s116, %s117
      %p126 = scmp.eq.s32.totalorder %s22, 0
      %p127 = por %p125, %p126
      %p128 = scmp.ne.s32.totalorder %s116, %s117
      %p129 = scmp.eq.s32.totalorder %s23, 1
      %p130 = por %p128, %p129
      %p132 = scmp.ne.s32.totalorder %s117, %s131
      %p133 = scmp.eq.s32.totalorder %s23, 0
      %p134 = por %p132, %p133
      %s135 = ssub.s32 %s17, %s24
      %p136 = scmp.eq.s32.totalorder %s135, 0
      %s138 = sadd.s32 %s137, 1
      %s139 = scalar_select %p136, %s137, %s138
      %p142 = pneg %p136
      %p143 = scmp.eq.s32.totalorder %s17, 1
      %p144 = por %p142, %p143
      %p145 = scmp.ne.s32.totalorder %s137, %s140
      %p146 = scmp.eq.s32.totalorder %s17, 0
      %p147 = por %p145, %p146
      %p148 = scmp.ne.s32.totalorder %s137, %s140
      %p149 = scmp.eq.s32.totalorder %s22, 1
      %p150 = por %p148, %p149
      %p151 = scmp.ne.s32.totalorder %s140, %s141
      %p152 = scmp.eq.s32.totalorder %s22, 0
      %p153 = por %p151, %p152
      %p154 = scmp.ne.s32.totalorder %s140, %s141
      %p155 = scmp.eq.s32.totalorder %s23, 1
      %p156 = por %p154, %p155
      %p158 = scmp.ne.s32.totalorder %s141, %s157
      %p159 = scmp.eq.s32.totalorder %s23, 0
      %p160 = por %p158, %p159
      %p161 = scmp.le.s32.totalorder 1, %s17
      %p162 = scmp.lt.s32.totalorder %s17, 3
      %p163 = pnand %p161, %p162
      %p164 = pneg %p163
      // Predicated region
      $region9: #{coord_att_pallas.1} parent=5 // pred_check
        _
      $region10: #{coord_att_pallas.1} parent=5 // pred_check_branch
        %166 = sbr.rel (%p163) target = $region12
      $region11: #{coord_att_pallas.1} parent=5 // pred_region
        %s167 = ssub.s32 %s17, 1
        // Predicated region
        $region13: #{coord_att_pallas.1} parent=11 // pred_check
          %p168 = pneg %p64
        $region14: #{coord_att_pallas.1} parent=11 // pred_check_branch
          %170 = sbr.rel (%p168) target = $region16
        $region15: #{coord_att_pallas.1} parent=11 // pred_region
          _
        $region16: #{coord_att_pallas.1} parent=11 // pred_fallthru
          _
        // Predicated region
        $region17: #{coord_att_pallas.1} parent=11 // pred_check
          %p171 = pneg %p85
        $region18: #{coord_att_pallas.1} parent=11 // pred_check_branch
          %173 = sbr.rel (%p171) target = $region20
        $region19: #{coord_att_pallas.1} parent=11 // pred_region
          _
        $region20: #{coord_att_pallas.1} parent=11 // pred_fallthru
          _
        // Predicated region
        $region21: #{coord_att_pallas.1} parent=11 // pred_check
          %p174 = pneg %p106
        $region22: #{coord_att_pallas.1} parent=11 // pred_check_branch
          %176 = sbr.rel (%p174) target = $region24
        $region23: #{coord_att_pallas.1} parent=11 // pred_region
          _
        $region24: #{coord_att_pallas.1} parent=11 // pred_fallthru
          _
        // Predicated region
        $region25: #{coord_att_pallas.1} parent=11 // pred_check
          %p177 = pneg %p127
        $region26: #{coord_att_pallas.1} parent=11 // pred_check_branch
          %179 = sbr.rel (%p177) target = $region28
        $region27: #{coord_att_pallas.1} parent=11 // pred_region
          _
        $region28: #{coord_att_pallas.1} parent=11 // pred_fallthru
          _
      $region12: #{coord_att_pallas.1} parent=5 // pred_fallthru
        _
      %p180 = scmp.lt.s32.totalorder %s17, 2
      // Predicated region
      $region29: #{coord_att_pallas.1} parent=5 // pred_check
        %p181 = pneg %p180
      $region30: #{coord_att_pallas.1} parent=5 // pred_check_branch
        %183 = sbr.rel (%p181) target = $region32
      $region31: #{coord_att_pallas.1} parent=5 // pred_region
        // Predicated region
        $region33: #{coord_att_pallas.1} parent=31 // pred_check
          %p184 = pneg %p37
        $region34: #{coord_att_pallas.1} parent=31 // pred_check_branch
          %186 = sbr.rel (%p184) target = $region36
        $region35: #{coord_att_pallas.1} parent=31 // pred_region
          %s187 = sand.u32 %s27, 1
          %s188 = scalar_lea.sflag [#allocation3], %s187
          %s189 = sand.u32 %s27, 1
          %s190 = smul.addr %s189, 64
          %s191 = scalar_lea.vmem [#allocation2], %s190
          %s193 = ssub.s32 1024, 1024
          %194 = vsyncadd %s188, %s193
          %s195 = smul.addr %s17, 8
          %s196 = smul.addr %s195, 128
          %s197 = scalar_lea.hbm %s0, %s196
          %s198 = sshll.u32 %s191, 4
          %s199 = int_to_ptr.vmem [resolvable:$true] %s198
          %204 = dma.hbm_to_vmem [thread:$0]  %s197, 1024, %s199, %s188, 128, 128, 8
        $region36: #{coord_att_pallas.1} parent=31 // pred_fallthru
          _
      $region32: #{coord_att_pallas.1} parent=5 // pred_fallthru
        _
      %p205 = scmp.le.s32.totalorder 1, %s17
      %p206 = scmp.lt.s32.totalorder %s17, 3
      %p207 = pnand %p205, %p206
      %p208 = pneg %p207
      // Predicated region
      $region37: #{coord_att_pallas.1} parent=5 // pred_check
        _
      $region38: #{coord_att_pallas.1} parent=5 // pred_check_branch
        %210 = sbr.rel (%p207) target = $region40
      $region39: #{coord_att_pallas.1} parent=5 // pred_region
        %s211 = ssub.s32 %s17, 1
        %s212 = sand.u32 %s30, 1
        %s213 = scalar_lea.sflag [#allocation3], %s212
        %s214 = sand.u32 %s30, 1
        %s215 = smul.addr %s214, 64
        %s216 = scalar_lea.vmem [#allocation2], %s215
        // Predicated region
        $region41: #{coord_att_pallas.1} parent=39 // pred_check
          %p217 = pneg %p43
        $region42: #{coord_att_pallas.1} parent=39 // pred_check_branch
          %219 = sbr.rel (%p217) target = $region44
        $region43: #{coord_att_pallas.1} parent=39 // pred_region
          %220 = dma.done %s213, 1024
        $region44: #{coord_att_pallas.1} parent=39 // pred_fallthru
          _
        %s221 = sand.u32 %s30, 1
        %s222 = scalar_lea.sflag [#allocation3], %s221
        %s223 = sand.u32 %s30, 1
        %s224 = smul.addr %s223, 64
        %s225 = scalar_lea.vmem [#allocation2], %s224
        %p226 = pneg %p43
        %p227 = pneg %p40
        %p228 = pneg %p64
        %p229 = pneg %p61
        %p230 = pneg %p85
        %p231 = pneg %p82
        %p232 = pneg %p106
        %p233 = pneg %p103
        %p234 = pneg %p127
        %p235 = pneg %p124
        %p236 = pneg %p153
        %p237 = pneg %p150
        %s238 = sand.u32 %s140, 1
        %s239 = scalar_lea.sflag [#allocation4], %s238
        %s240 = sand.u32 %s140, 1
        %s241 = smul.addr %s240, 64
        %s242 = scalar_lea.vmem [#allocation5], %s241
        %v243 = vld [vmem:[%s216] sm:$0xff]
        %v244 = vld [vmem:[%s216 + $0x8] sm:$0xff]
        %v245 = vld [vmem:[%s216 + $0x10] sm:$0xff]
        %v246 = vld [vmem:[%s216 + $0x18] sm:$0xff]
        %v247 = vld [vmem:[%s216 + $0x20] sm:$0xff]
        %v248 = vld [vmem:[%s216 + $0x28] sm:$0xff]
        %v249 = vld [vmem:[%s216 + $0x30] sm:$0xff]
        %v250 = vld [vmem:[%s216 + $0x38] sm:$0xff]
        %vm251 = vcmask 130048
        %v252 = vsel %vm251, %v243, 0.0
        %253 = vadd.xlane.f32.xlu0 %v252
        %v254 = vpop.xlane.xlu0 %253
        %v255 = vsel %vm251, %v244, 0.0
        %256 = vadd.xlane.f32.xlu0 %v255
        %v257 = vpop.xlane.xlu0 %256
        %v258 = vsel %vm251, %v245, 0.0
        %259 = vadd.xlane.f32.xlu0 %v258
        %v260 = vpop.xlane.xlu0 %259
        %v261 = vsel %vm251, %v246, 0.0
        %262 = vadd.xlane.f32.xlu0 %v261
        %v263 = vpop.xlane.xlu0 %262
        %v264 = vsel %vm251, %v247, 0.0
        %265 = vadd.xlane.f32.xlu0 %v264
        %v266 = vpop.xlane.xlu0 %265
        %v267 = vsel %vm251, %v248, 0.0
        %268 = vadd.xlane.f32.xlu0 %v267
        %v269 = vpop.xlane.xlu0 %268
        %v270 = vsel %vm251, %v249, 0.0
        %271 = vadd.xlane.f32.xlu0 %v270
        %v272 = vpop.xlane.xlu0 %271
        %v273 = vsel %vm251, %v250, 0.0
        %274 = vadd.xlane.f32.xlu0 %v273
        %v275 = vpop.xlane.xlu0 %274
        %v276 = vmul.f32 %v254, 0.0625
        %v277 = vmul.f32 %v257, 0.0625
        %v278 = vmul.f32 %v260, 0.0625
        %v279 = vmul.f32 %v263, 0.0625
        %v280 = vmul.f32 %v266, 0.0625
        %v281 = vmul.f32 %v269, 0.0625
        %v282 = vmul.f32 %v272, 0.0625
        %v283 = vmul.f32 %v275, 0.0625
        %v284 = vadd.f32 %v252, %v255
        %v285 = vrot.slane %v284, 4
        %v286 = vadd.f32 %v284, %v285
        %v287 = vrot.slane %v286, 2
        %v288 = vadd.f32 %v286, %v287
        %v289 = vrot.slane %v288, 1
        %v290 = vadd.f32 %v288, %v289
        %v291 = vadd.f32 %v258, %v261
        %v292 = vrot.slane %v291, 4
        %v293 = vadd.f32 %v291, %v292
        %v294 = vrot.slane %v293, 2
        %v295 = vadd.f32 %v293, %v294
        %v296 = vrot.slane %v295, 1
        %v297 = vadd.f32 %v295, %v296
        %v298 = vadd.f32 %v264, %v267
        %v299 = vrot.slane %v298, 4
        %v300 = vadd.f32 %v298, %v299
        %v301 = vrot.slane %v300, 2
        %v302 = vadd.f32 %v300, %v301
        %v303 = vrot.slane %v302, 1
        %v304 = vadd.f32 %v302, %v303
        %v305 = vadd.f32 %v270, %v273
        %v306 = vrot.slane %v305, 4
        %v307 = vadd.f32 %v305, %v306
        %v308 = vrot.slane %v307, 2
        %v309 = vadd.f32 %v307, %v308
        %v310 = vrot.slane %v309, 1
        %v311 = vadd.f32 %v309, %v310
        %v312 = vmul.f32 %v290, 0.0625
        %v313 = vmul.f32 %v297, 0.0625
        %v314 = vmul.f32 %v304, 0.0625
        %v315 = vmul.f32 %v311, 0.0625
        %v316 = vld [vmem:[%s1] sm:$0xff]
        %v317 = vld [vmem:[%s2] sm:$0xff]
        %319 = vset.pattern.permute.xlu0 0
        %320 = vperm.xlu0 %319, %v317
        %v321 = vpop.permute.xlu0 %320
        %v331 = vlaneseq
        %v332 = vand.u32 %v331, 127
        %v333 = vlaneseq
        %v334 = vshrl.u32 %v333, 7
        %v335 = vsub.s32 %v332, %v334
        %v336 = vrot.slane %v276, %v335
        %v337 = vadd.s32 %v332, 4294967288
        %v338 = vlaneseq
        %v339 = vshrl.u32 %v338, 7
        %v340 = vsub.s32 %v337, %v339
        %v341 = vrot.slane %v277, %v340
        %vm342 = vcmask 130112
        %v343 = vsel %vm342, %v341, %v336
        %v344 = vlaneseq
        %v345 = vshrl.u32 %v344, 7
        %v346 = vsub.s32 %v332, %v345
        %v347 = vrot.slane %v278, %v346
        %v348 = vlaneseq
        %v349 = vshrl.u32 %v348, 7
        %v350 = vsub.s32 %v337, %v349
        %v351 = vrot.slane %v279, %v350
        %v352 = vsel %vm342, %v351, %v347
        %v353 = vlaneseq
        %v354 = vshrl.u32 %v353, 7
        %v355 = vsub.s32 %v332, %v354
        %v356 = vrot.slane %v280, %v355
        %v357 = vlaneseq
        %v358 = vshrl.u32 %v357, 7
        %v359 = vsub.s32 %v337, %v358
        %v360 = vrot.slane %v281, %v359
        %v361 = vsel %vm342, %v360, %v356
        %v362 = vlaneseq
        %v363 = vshrl.u32 %v362, 7
        %v364 = vsub.s32 %v332, %v363
        %v365 = vrot.slane %v282, %v364
        %v366 = vlaneseq
        %v367 = vshrl.u32 %v366, 7
        %v368 = vsub.s32 %v337, %v367
        %v369 = vrot.slane %v283, %v368
        %v370 = vsel %vm342, %v369, %v365
        %vm371 = vcmask 1041409
        %v372 = vsel %vm371, %v352, %v343
        %vm373 = vcmask 1042434
        %v374 = vsel %vm373, %v361, %v372
        %vm375 = vcmask 1043459
        %v376 = vsel %vm375, %v370, %v374
        %vm377 = vcmask 31744
        %v379 = vsel %vm377, %v316, 0
        %vm381 = vcmask 1043456
        %v382 = vsel %vm381, %v376, 0
        %384 = vmatprep.subr.mxu0 0.0
        %385 = vmatpush1.msra.mxu0 0.0
        %386 = vmatprep.subr.mxu0 0.0
        %387 = vmatpush1.msra.mxu0 0.0
        %388 = vmatprep.subr.mxu0 0.0
        %389 = vmatpush1.msra.mxu0 0.0
        %390 = vmatprep.subr.mxu0 0.0
        %391 = vmatpush1.msra.mxu0 0.0
        %392 = vmatprep.subr.mxu0 0.0
        %393 = vmatpush1.msra.mxu0 0.0
        %394 = vmatprep.subr.mxu0 0.0
        %395 = vmatpush1.msra.mxu0 0.0
        %396 = vmatprep.subr.mxu0 0.0
        %397 = vmatpush1.msra.mxu0 0.0
        %398 = vmatprep.subr.mxu0 0.0
        %399 = vmatpush1.msra.mxu0 0.0
        %400 = vmatprep.subr.mxu0 0.0
        %401 = vmatpush1.msra.mxu0 0.0
        %402 = vmatprep.subr.mxu0 0.0
        %403 = vmatpush1.msra.mxu0 0.0
        %404 = vmatprep.subr.mxu0 0.0
        %405 = vmatpush1.msra.mxu0 0.0
        %406 = vmatprep.subr.mxu0 0.0
        %407 = vmatpush1.msra.mxu0 0.0
        %408 = vmatprep.subr.mxu0 0.0
        %409 = vmatpush1.msra.mxu0 0.0
        %410 = vmatprep.subr.mxu0 0.0
        %411 = vmatpush1.msra.mxu0 0.0
        %412 = vmatprep.subr.mxu0 0.0
        %413 = vmatpush1.msra.mxu0 0.0
        %414 = vmatprep.subr.mxu0 0.0
        %415 = vmatpush1.msra.mxu0 %v382
        %416 = vmatprep.subr.mxu0 0.0
        %417 = vmatpush2.msra.mxu0 0.0
        %418 = vmatprep.subr.mxu0 0.0
        %419 = vmatpush2.msra.mxu0 0.0
        %420 = vmatprep.subr.mxu0 0.0
        %421 = vmatpush2.msra.mxu0 0.0
        %422 = vmatprep.subr.mxu0 0.0
        %423 = vmatpush2.msra.mxu0 0.0
        %424 = vmatprep.subr.mxu0 0.0
        %425 = vmatpush2.msra.mxu0 0.0
        %426 = vmatprep.subr.mxu0 0.0
        %427 = vmatpush2.msra.mxu0 0.0
        %428 = vmatprep.subr.mxu0 0.0
        %429 = vmatpush2.msra.mxu0 0.0
        %430 = vmatprep.subr.mxu0 0.0
        %431 = vmatpush2.msra.mxu0 0.0
        %432 = vmatprep.subr.mxu0 0.0
        %433 = vmatpush2.msra.mxu0 0.0
        %434 = vmatprep.subr.mxu0 0.0
        %435 = vmatpush2.msra.mxu0 0.0
        %436 = vmatprep.subr.mxu0 0.0
        %437 = vmatpush2.msra.mxu0 0.0
        %438 = vmatprep.subr.mxu0 0.0
        %439 = vmatpush2.msra.mxu0 0.0
        %440 = vmatprep.subr.mxu0 0.0
        %441 = vmatpush2.msra.mxu0 0.0
        %442 = vmatprep.subr.mxu0 0.0
        %443 = vmatpush2.msra.mxu0 0.0
        %444 = vmatprep.subr.mxu0 0.0
        %445 = vmatpush2.msra.mxu0 0.0
        %446 = vmatprep.subr.mxu0 0.0
        %447 = vmatpush2.msra.mxu0 0.0
        %448 = vmatprep.mubr.f32.mxu0 0.0
        %449 = vmatmul.mubr.f32.gmra.mxu0 %v379
        %v450 = vpop.f32.mrf.mxu0
        %v451 = vadd.f32 %v321, %v450
        %v452 = vpop.f32.mrf.mxu0
        %453 = vdwg.mxu0
        %v454 = vadd.f32 %v451, 3.0
        %v455 = vmax.f32 %v454, 0.0
        %v456 = vmin.f32 %v455, 6.0
        %v457 = vmul.f32 %v456, 0.16666667
        %v458 = vmul.f32 %v451, %v457
        %v459 = vld [vmem:[%s3] sm:$0xf]
        %v460 = vld [vmem:[%s4] sm:$0xf]
        %462 = vset.pattern.permute.xlu0 0
        %463 = vperm.xlu0 %462, %v460
        %v464 = vpop.permute.xlu0 %463
        %vm466 = vcmask 64512
        %v468 = vsel %vm466, %v459, 0
        %470 = vmatprep.subr.mxu0 0.0
        %471 = vmatpush1.msra.mxu0 0.0
        %472 = vmatprep.subr.mxu0 0.0
        %473 = vmatpush1.msra.mxu0 0.0
        %474 = vmatprep.subr.mxu0 0.0
        %475 = vmatpush1.msra.mxu0 0.0
        %476 = vmatprep.subr.mxu0 0.0
        %477 = vmatpush1.msra.mxu0 0.0
        %478 = vmatprep.subr.mxu0 0.0
        %479 = vmatpush1.msra.mxu0 0.0
        %480 = vmatprep.subr.mxu0 0.0
        %481 = vmatpush1.msra.mxu0 0.0
        %482 = vmatprep.subr.mxu0 0.0
        %483 = vmatpush1.msra.mxu0 0.0
        %484 = vmatprep.subr.mxu0 0.0
        %485 = vmatpush1.msra.mxu0 0.0
        %486 = vmatprep.subr.mxu0 0.0
        %487 = vmatpush1.msra.mxu0 0.0
        %488 = vmatprep.subr.mxu0 0.0
        %489 = vmatpush1.msra.mxu0 0.0
        %490 = vmatprep.subr.mxu0 0.0
        %491 = vmatpush1.msra.mxu0 0.0
        %492 = vmatprep.subr.mxu0 0.0
        %493 = vmatpush1.msra.mxu0 0.0
        %494 = vmatprep.subr.mxu0 0.0
        %495 = vmatpush1.msra.mxu0 0.0
        %496 = vmatprep.subr.mxu0 0.0
        %497 = vmatpush1.msra.mxu0 0.0
        %498 = vmatprep.subr.mxu0 0.0
        %499 = vmatpush1.msra.mxu0 0.0
        %500 = vmatprep.subr.mxu0 0.0
        %501 = vmatpush1.msra.mxu0 %v458
        %502 = vmatprep.subr.mxu0 0.0
        %503 = vmatpush2.msra.mxu0 0.0
        %504 = vmatprep.subr.mxu0 0.0
        %505 = vmatpush2.msra.mxu0 0.0
        %506 = vmatprep.subr.mxu0 0.0
        %507 = vmatpush2.msra.mxu0 0.0
        %508 = vmatprep.subr.mxu0 0.0
        %509 = vmatpush2.msra.mxu0 0.0
        %510 = vmatprep.subr.mxu0 0.0
        %511 = vmatpush2.msra.mxu0 0.0
        %512 = vmatprep.subr.mxu0 0.0
        %513 = vmatpush2.msra.mxu0 0.0
        %514 = vmatprep.subr.mxu0 0.0
        %515 = vmatpush2.msra.mxu0 0.0
        %516 = vmatprep.subr.mxu0 0.0
        %517 = vmatpush2.msra.mxu0 0.0
        %518 = vmatprep.subr.mxu0 0.0
        %519 = vmatpush2.msra.mxu0 0.0
        %520 = vmatprep.subr.mxu0 0.0
        %521 = vmatpush2.msra.mxu0 0.0
        %522 = vmatprep.subr.mxu0 0.0
        %523 = vmatpush2.msra.mxu0 0.0
        %524 = vmatprep.subr.mxu0 0.0
        %525 = vmatpush2.msra.mxu0 0.0
        %526 = vmatprep.subr.mxu0 0.0
        %527 = vmatpush2.msra.mxu0 0.0
        %528 = vmatprep.subr.mxu0 0.0
        %529 = vmatpush2.msra.mxu0 0.0
        %530 = vmatprep.subr.mxu0 0.0
        %531 = vmatpush2.msra.mxu0 0.0
        %532 = vmatprep.subr.mxu0 0.0
        %533 = vmatpush2.msra.mxu0 0.0
        %534 = vmatprep.mubr.f32.mxu0 0.0
        %535 = vmatmul.mubr.f32.gmra.mxu0 %v468
        %v536 = vpop.f32.mrf.mxu0
        %v537 = vadd.f32 %v464, %v536
        %v538 = vpop.f32.mrf.mxu0
        %539 = vdwg.mxu0
        %v540 = vxor.u32 %v537, 2147483648
        %v541 = vmul.f32 %v540, 1.442695
        %v542 = vpow.pop %v541
        %v543 = vadd.f32 %v542, 1.0
        %v544 = vrcp.pop %v543
        %v545 = vmul.f32 1.0, %v544
        %v550 = vsel %vm371, %v313, %v312
        %v551 = vsel %vm373, %v314, %v550
        %v552 = vsel %vm375, %v315, %v551
        %v553 = vsel %vm381, %v552, 0
        %555 = vmatprep.subr.mxu0 0.0
        %556 = vmatpush1.msra.mxu0 0.0
        %557 = vmatprep.subr.mxu0 0.0
        %558 = vmatpush1.msra.mxu0 0.0
        %559 = vmatprep.subr.mxu0 0.0
        %560 = vmatpush1.msra.mxu0 0.0
        %561 = vmatprep.subr.mxu0 0.0
        %562 = vmatpush1.msra.mxu0 0.0
        %563 = vmatprep.subr.mxu0 0.0
        %564 = vmatpush1.msra.mxu0 0.0
        %565 = vmatprep.subr.mxu0 0.0
        %566 = vmatpush1.msra.mxu0 0.0
        %567 = vmatprep.subr.mxu0 0.0
        %568 = vmatpush1.msra.mxu0 0.0
        %569 = vmatprep.subr.mxu0 0.0
        %570 = vmatpush1.msra.mxu0 0.0
        %571 = vmatprep.subr.mxu0 0.0
        %572 = vmatpush1.msra.mxu0 0.0
        %573 = vmatprep.subr.mxu0 0.0
        %574 = vmatpush1.msra.mxu0 0.0
        %575 = vmatprep.subr.mxu0 0.0
        %576 = vmatpush1.msra.mxu0 0.0
        %577 = vmatprep.subr.mxu0 0.0
        %578 = vmatpush1.msra.mxu0 0.0
        %579 = vmatprep.subr.mxu0 0.0
        %580 = vmatpush1.msra.mxu0 0.0
        %581 = vmatprep.subr.mxu0 0.0
        %582 = vmatpush1.msra.mxu0 0.0
        %583 = vmatprep.subr.mxu0 0.0
        %584 = vmatpush1.msra.mxu0 0.0
        %585 = vmatprep.subr.mxu0 0.0
        %586 = vmatpush1.msra.mxu0 %v553
        %587 = vmatprep.subr.mxu0 0.0
        %588 = vmatpush2.msra.mxu0 0.0
        %589 = vmatprep.subr.mxu0 0.0
        %590 = vmatpush2.msra.mxu0 0.0
        %591 = vmatprep.subr.mxu0 0.0
        %592 = vmatpush2.msra.mxu0 0.0
        %593 = vmatprep.subr.mxu0 0.0
        %594 = vmatpush2.msra.mxu0 0.0
        %595 = vmatprep.subr.mxu0 0.0
        %596 = vmatpush2.msra.mxu0 0.0
        %597 = vmatprep.subr.mxu0 0.0
        %598 = vmatpush2.msra.mxu0 0.0
        %599 = vmatprep.subr.mxu0 0.0
        %600 = vmatpush2.msra.mxu0 0.0
        %601 = vmatprep.subr.mxu0 0.0
        %602 = vmatpush2.msra.mxu0 0.0
        %603 = vmatprep.subr.mxu0 0.0
        %604 = vmatpush2.msra.mxu0 0.0
        %605 = vmatprep.subr.mxu0 0.0
        %606 = vmatpush2.msra.mxu0 0.0
        %607 = vmatprep.subr.mxu0 0.0
        %608 = vmatpush2.msra.mxu0 0.0
        %609 = vmatprep.subr.mxu0 0.0
        %610 = vmatpush2.msra.mxu0 0.0
        %611 = vmatprep.subr.mxu0 0.0
        %612 = vmatpush2.msra.mxu0 0.0
        %613 = vmatprep.subr.mxu0 0.0
        %614 = vmatpush2.msra.mxu0 0.0
        %615 = vmatprep.subr.mxu0 0.0
        %616 = vmatpush2.msra.mxu0 0.0
        %617 = vmatprep.subr.mxu0 0.0
        %618 = vmatpush2.msra.mxu0 0.0
        %619 = vmatprep.mubr.f32.mxu0 0.0
        %620 = vmatmul.mubr.f32.gmra.mxu0 %v379
        %v621 = vpop.f32.mrf.mxu0
        %v622 = vadd.f32 %v321, %v621
        %v623 = vpop.f32.mrf.mxu0
        %624 = vdwg.mxu0
        %v625 = vadd.f32 %v622, 3.0
        %v626 = vmax.f32 %v625, 0.0
        %v627 = vmin.f32 %v626, 6.0
        %v628 = vmul.f32 %v627, 0.16666667
        %v629 = vmul.f32 %v622, %v628
        %s630 = scalar_lea.vmem %s3, 4
        %v631 = vld [vmem:[%s630] sm:$0xf]
        %s632 = scalar_lea.vmem %s4, 4
        %v633 = vld [vmem:[%s632] sm:$0xf]
        %635 = vset.pattern.permute.xlu0 0
        %636 = vperm.xlu0 %635, %v633
        %v637 = vpop.permute.xlu0 %636
        %v640 = vsel %vm466, %v631, 0
        %642 = vmatprep.subr.mxu0 0.0
        %643 = vmatpush1.msra.mxu0 0.0
        %644 = vmatprep.subr.mxu0 0.0
        %645 = vmatpush1.msra.mxu0 0.0
        %646 = vmatprep.subr.mxu0 0.0
        %647 = vmatpush1.msra.mxu0 0.0
        %648 = vmatprep.subr.mxu0 0.0
        %649 = vmatpush1.msra.mxu0 0.0
        %650 = vmatprep.subr.mxu0 0.0
        %651 = vmatpush1.msra.mxu0 0.0
        %652 = vmatprep.subr.mxu0 0.0
        %653 = vmatpush1.msra.mxu0 0.0
        %654 = vmatprep.subr.mxu0 0.0
        %655 = vmatpush1.msra.mxu0 0.0
        %656 = vmatprep.subr.mxu0 0.0
        %657 = vmatpush1.msra.mxu0 0.0
        %658 = vmatprep.subr.mxu0 0.0
        %659 = vmatpush1.msra.mxu0 0.0
        %660 = vmatprep.subr.mxu0 0.0
        %661 = vmatpush1.msra.mxu0 0.0
        %662 = vmatprep.subr.mxu0 0.0
        %663 = vmatpush1.msra.mxu0 0.0
        %664 = vmatprep.subr.mxu0 0.0
        %665 = vmatpush1.msra.mxu0 0.0
        %666 = vmatprep.subr.mxu0 0.0
        %667 = vmatpush1.msra.mxu0 0.0
        %668 = vmatprep.subr.mxu0 0.0
        %669 = vmatpush1.msra.mxu0 0.0
        %670 = vmatprep.subr.mxu0 0.0
        %671 = vmatpush1.msra.mxu0 0.0
        %672 = vmatprep.subr.mxu0 0.0
        %673 = vmatpush1.msra.mxu0 %v629
        %674 = vmatprep.subr.mxu0 0.0
        %675 = vmatpush2.msra.mxu0 0.0
        %676 = vmatprep.subr.mxu0 0.0
        %677 = vmatpush2.msra.mxu0 0.0
        %678 = vmatprep.subr.mxu0 0.0
        %679 = vmatpush2.msra.mxu0 0.0
        %680 = vmatprep.subr.mxu0 0.0
        %681 = vmatpush2.msra.mxu0 0.0
        %682 = vmatprep.subr.mxu0 0.0
        %683 = vmatpush2.msra.mxu0 0.0
        %684 = vmatprep.subr.mxu0 0.0
        %685 = vmatpush2.msra.mxu0 0.0
        %686 = vmatprep.subr.mxu0 0.0
        %687 = vmatpush2.msra.mxu0 0.0
        %688 = vmatprep.subr.mxu0 0.0
        %689 = vmatpush2.msra.mxu0 0.0
        %690 = vmatprep.subr.mxu0 0.0
        %691 = vmatpush2.msra.mxu0 0.0
        %692 = vmatprep.subr.mxu0 0.0
        %693 = vmatpush2.msra.mxu0 0.0
        %694 = vmatprep.subr.mxu0 0.0
        %695 = vmatpush2.msra.mxu0 0.0
        %696 = vmatprep.subr.mxu0 0.0
        %697 = vmatpush2.msra.mxu0 0.0
        %698 = vmatprep.subr.mxu0 0.0
        %699 = vmatpush2.msra.mxu0 0.0
        %700 = vmatprep.subr.mxu0 0.0
        %701 = vmatpush2.msra.mxu0 0.0
        %702 = vmatprep.subr.mxu0 0.0
        %703 = vmatpush2.msra.mxu0 0.0
        %704 = vmatprep.subr.mxu0 0.0
        %705 = vmatpush2.msra.mxu0 0.0
        %706 = vmatprep.mubr.f32.mxu0 0.0
        %707 = vmatmul.mubr.f32.gmra.mxu0 %v640
        %v708 = vpop.f32.mrf.mxu0
        %v709 = vadd.f32 %v637, %v708
        %v710 = vpop.f32.mrf.mxu0
        %711 = vdwg.mxu0
        %v712 = vxor.u32 %v709, 2147483648
        %v713 = vmul.f32 %v712, 1.442695
        %v714 = vpow.pop %v713
        %v715 = vadd.f32 %v714, 1.0
        %v716 = vrcp.pop %v715
        %v717 = vmul.f32 1.0, %v716
        %v718 = vlaneseq
        %v719 = vshrl.u32 %v718, 7
        %v720 = vsub.s32 0, %v719
        %v721 = vrot.slane %v545, %v720
        %723 = vbcast.lane.b32.xlu0 %v721, 256
        %v724 = vpop.permute.xlu0 %723
        %s726 = sor.u32 256, 8
        %727 = vbcast.lane.b32.xlu0 %v721, %s726
        %v728 = vpop.permute.xlu0 %727
        %v729 = vlaneseq
        %v730 = vshrl.u32 %v729, 7
        %v731 = vsub.s32 1, %v730
        %v732 = vrot.slane %v545, %v731
        %734 = vbcast.lane.b32.xlu0 %v732, 256
        %v735 = vpop.permute.xlu0 %734
        %s737 = sor.u32 256, 8
        %738 = vbcast.lane.b32.xlu0 %v732, %s737
        %v739 = vpop.permute.xlu0 %738
        %v740 = vlaneseq
        %v741 = vshrl.u32 %v740, 7
        %v742 = vsub.s32 2, %v741
        %v743 = vrot.slane %v545, %v742
        %745 = vbcast.lane.b32.xlu0 %v743, 256
        %v746 = vpop.permute.xlu0 %745
        %s748 = sor.u32 256, 8
        %749 = vbcast.lane.b32.xlu0 %v743, %s748
        %v750 = vpop.permute.xlu0 %749
        %v751 = vlaneseq
        %v752 = vshrl.u32 %v751, 7
        %v753 = vsub.s32 3, %v752
        %v754 = vrot.slane %v545, %v753
        %756 = vbcast.lane.b32.xlu0 %v754, 256
        %v757 = vpop.permute.xlu0 %756
        %s759 = sor.u32 256, 8
        %760 = vbcast.lane.b32.xlu0 %v754, %s759
        %v761 = vpop.permute.xlu0 %760
        %v762 = vmul.f32 %v243, %v724
        %v763 = vmul.f32 %v244, %v728
        %v764 = vmul.f32 %v245, %v735
        %v765 = vmul.f32 %v246, %v739
        %v766 = vmul.f32 %v247, %v746
        %v767 = vmul.f32 %v248, %v750
        %v768 = vmul.f32 %v249, %v757
        %v769 = vmul.f32 %v250, %v761
        %v772 = vunpack.c.l.s4 1966171168
        %v773 = vunpack.c.0.s8 %v772
        %v774 = vlaneseq
        %v775 = vshrl.u32 %v774, 7
        %v776 = vsub.s32 %v773, %v775
        %v777 = vrot.slane %v717, %v776
        %v778 = vcombine.high %v777, %v777
        %v780 = vunpack.c.l.s4 1966171168
        %v781 = vunpack.c.0.s8 %v780
        %v782 = vlaneseq
        %v783 = vshrl.u32 %v782, 7
        %v784 = vsub.s32 %v781, %v783
        %v785 = vrot.slane %v777, %v784
        %v787 = vunpack.c.l.s4 1966171168
        %v788 = vunpack.c.0.s8 %v787
        %v789 = vlaneseq
        %v790 = vshrl.u32 %v789, 7
        %v791 = vsub.s32 %v788, %v790
        %v792 = vrot.slane %v778, %v791
        %v793 = vcombine.high %v785, %v785
        %v794 = vcombine.high %v792, %v792
        %v795 = vlaneseq
        %v796 = vshrl.u32 %v795, 7
        %v797 = vsub.s32 0, %v796
        %v798 = vrot.slane %v785, %v797
        %v799 = vlaneseq
        %v800 = vshrl.u32 %v799, 7
        %v801 = vsub.s32 0, %v800
        %v802 = vrot.slane %v792, %v801
        %v803 = vlaneseq
        %v804 = vshrl.u32 %v803, 7
        %v805 = vsub.s32 0, %v804
        %v806 = vrot.slane %v793, %v805
        %v807 = vlaneseq
        %v808 = vshrl.u32 %v807, 7
        %v809 = vsub.s32 0, %v808
        %v810 = vrot.slane %v794, %v809
        %v815 = vmul.f32 %v762, %v798
        %v816 = vmul.f32 %v763, %v798
        %v817 = vmul.f32 %v764, %v802
        %v818 = vmul.f32 %v765, %v802
        %v819 = vmul.f32 %v766, %v806
        %v820 = vmul.f32 %v767, %v806
        %v821 = vmul.f32 %v768, %v810
        %v822 = vmul.f32 %v769, %v810
        %823 = vst.msk [vmem:[%s242] sm:$0xff] %vm251, %v815
        %824 = vst.msk [vmem:[%s242 + $0x8] sm:$0xff] %vm251, %v816
        %825 = vst.msk [vmem:[%s242 + $0x10] sm:$0xff] %vm251, %v817
        %826 = vst.msk [vmem:[%s242 + $0x18] sm:$0xff] %vm251, %v818
        %827 = vst.msk [vmem:[%s242 + $0x20] sm:$0xff] %vm251, %v819
        %828 = vst.msk [vmem:[%s242 + $0x28] sm:$0xff] %vm251, %v820
        %829 = vst.msk [vmem:[%s242 + $0x30] sm:$0xff] %vm251, %v821
        %830 = vst.msk [vmem:[%s242 + $0x38] sm:$0xff] %vm251, %v822
        %s831 = sand.u32 %s140, 1
        %s832 = scalar_lea.sflag [#allocation4], %s831
        %s833 = sand.u32 %s140, 1
        %s834 = smul.addr %s833, 64
        %s835 = scalar_lea.vmem [#allocation5], %s834
        // Predicated region
        $region45: #{coord_att_pallas.1} parent=39 // pred_check
          %p836 = pneg %p150
        $region46: #{coord_att_pallas.1} parent=39 // pred_check_branch
          %838 = sbr.rel (%p836) target = $region48
        $region47: #{coord_att_pallas.1} parent=39 // pred_region
          %s840 = ssub.s32 1024, 1024
          %841 = vsyncadd %s832, %s840
          %s842 = smul.addr %s22, 8
          %s843 = smul.addr %s842, 128
          %s844 = scalar_lea.hbm %s5, %s843
          %s845 = sshll.u32 %s835, 4
          %s846 = int_to_ptr.vmem [resolvable:$true] %s845
          %851 = dma.vmem_to_hbm [thread:$0]  %s846, 1024, %s844, %s832, 128, 128, 8
        $region48: #{coord_att_pallas.1} parent=39 // pred_fallthru
          _
      $region40: #{coord_att_pallas.1} parent=5 // pred_fallthru
        _
      %p852 = scmp.le.s32.totalorder 2, %s17
      // Predicated region
      $region49: #{coord_att_pallas.1} parent=5 // pred_check
        %p853 = pneg %p852
      $region50: #{coord_att_pallas.1} parent=5 // pred_check_branch
        %855 = sbr.rel (%p853) target = $region52
      $region51: #{coord_att_pallas.1} parent=5 // pred_region
        %s856 = ssub.s32 %s17, 2
        // Predicated region
        $region53: #{coord_att_pallas.1} parent=51 // pred_check
          %p857 = pneg %p156
        $region54: #{coord_att_pallas.1} parent=51 // pred_check_branch
          %859 = sbr.rel (%p857) target = $region56
        $region55: #{coord_att_pallas.1} parent=51 // pred_region
          %s860 = sand.u32 %s141, 1
          %s861 = scalar_lea.sflag [#allocation4], %s860
          %s862 = sand.u32 %s141, 1
          %s863 = smul.addr %s862, 64
          %s864 = scalar_lea.vmem [#allocation5], %s863
          %865 = dma.done %s861, 1024
        $region56: #{coord_att_pallas.1} parent=51 // pred_fallthru
          _
      $region52: #{coord_att_pallas.1} parent=5 // pred_fallthru
        _
    $region6: #{coord_att_pallas.1} parent=1 // loop_footer
      %s21 = sadd.s32 1, %s17
    $region7: #{coord_att_pallas.1} parent=1 // loop_footer_branch
      %16 = sbr.rel target = $region3
    $region8: #{coord_att_pallas.1} parent=1 // loop_exit
      _
    %866 = vsyncpa [#allocation3], 1
    %s867 = scalar_lea.sflag [#allocation3], 1
    %868 = vsyncpa %s867, 1
    %869 = vsyncpa [#allocation4], 1
    %s870 = scalar_lea.sflag [#allocation4], 1
    %871 = vsyncpa %s870, 1

</llo_original>
